<compile_context>
chip_gen: v5e
topology: v5e:2x2
jax: 0.10.0
libtpu: 0.0.40
codegen_flags: <defaults>
</compile_context>

<pallas_src>
from functools import partial, reduce
from itertools import product

import numpy as np
import jax
import jax.numpy as jnp
from jax.experimental import pallas as pl
from jax.experimental.pallas import tpu as pltpu


def _parity_sign(x, nbits):
    """(-1)^popcount(x) as float32, for x with at most `nbits` significant bits.

    xor-fold parity using only the folds required for `nbits`, then build the
    +/-1.0 float directly from the sign bit (int ops + one same-width bitcast,
    no float multiply).
    """
    shift = 16
    while shift >= 1:
        if nbits > shift:
            x = x ^ (x >> shift)
        shift //= 2
    parity = x & 1
    bits = (parity << 31) | jnp.int32(0x3F800000)   # 0x3f800000 == 1.0f
    return pltpu.bitcast(bits, jnp.float32)


def _parity_matmul_kernel(x_ref, o_ref, acc_ref, *, parity_on_lhs, nbits, scale):
    """One (i, j, k) step of  out = P @ x  (lhs) or  out = x @ P  (rhs), where
    P[r, c] = (-1)^{popcount(r & c)} is generated on the fly (never touches HBM).

    Standard accumulating tiled matmul: k is the innermost "arbitrary" axis,
    the (i, j) output tile stays resident in the VMEM accumulator across k.
    """
    i = pl.program_id(0)
    j = pl.program_id(1)
    k = pl.program_id(2)

    @pl.when(k == 0)
    def _init():
        acc_ref[...] = jnp.zeros_like(acc_ref)

    if parity_on_lhs:
        tm, tk = o_ref.shape[0], x_ref.shape[0]
        rows = jax.lax.broadcasted_iota(jnp.int32, (tm, tk), 0) + i * tm
        cols = jax.lax.broadcasted_iota(jnp.int32, (tm, tk), 1) + k * tk
        p_tile = _parity_sign(rows & cols, nbits)
        acc_ref[...] += jnp.dot(p_tile, x_ref[...],
                                preferred_element_type=jnp.float32,
                                precision=jax.lax.Precision.HIGHEST)
    else:
        tk, tn = x_ref.shape[1], o_ref.shape[1]
        rows = jax.lax.broadcasted_iota(jnp.int32, (tk, tn), 0) + k * tk
        cols = jax.lax.broadcasted_iota(jnp.int32, (tk, tn), 1) + j * tn
        p_tile = _parity_sign(rows & cols, nbits)
        acc_ref[...] += jnp.dot(x_ref[...], p_tile,
                                preferred_element_type=jnp.float32,
                                precision=jax.lax.Precision.HIGHEST)

    @pl.when(k == pl.num_programs(2) - 1)
    def _finalize():
        o_ref[...] = acc_ref[...] * scale


def _pick_tiles(n_rows, n_cols, red):
    """Tile sizes for an (n_rows, red) @ (red, n_cols) matmul (all powers of 2)."""
    tm = min(n_rows, 256)          # fills the 256-row MXU tiles on v6e/v7x
    tn = min(n_cols, 512)          # lane-dense output tile (multiple of 128)
    tk = min(red, 512)
    # Expose >= 2 tiles on the parallel axes when the problem allows it, so the
    # "parallel" grid dims actually span both v7x TensorCores.
    if (n_rows // tm) * (n_cols // tn) < 2:
        if n_cols >= 256:
            tn = n_cols // 2
        elif n_rows >= 16:
            tm = n_rows // 2       # still a multiple of 8
    return tm, tn, tk


def _stage_params(in_blk_elems, out_blk_elems, gen_blk_elems):
    """CompilerParams with vmem_limit sized from the actual f32 buffers:
    2 pipeline buffers for the input and output blocks, the accumulator scratch,
    a few live copies of the generated parity tile, plus compiler-scratch slack.
    """
    est_bytes = 4 * (2 * in_blk_elems + 3 * out_blk_elems + 6 * gen_blk_elems)
    est_bytes += 4 << 20
    vmem_limit = int(min(56 << 20, max(32 << 20, est_bytes)))
    return pltpu.CompilerParams(
        dimension_semantics=("parallel", "parallel", "arbitrary"),
        vmem_limit_bytes=vmem_limit,
    )


def hamiltonian_to_pauli_string(hamiltonian_diag: jnp.ndarray) -> dict:
    """JAX/Pallas equivalent of Hamiltonian2PauliString.forward."""
    dims = hamiltonian_diag.shape[0]
    num_qubits = int(np.log2(dims))
    if not np.allclose(num_qubits - np.log2(dims), 0):
        raise ValueError("The dimension of Hamiltonian is not 2^{num_qubits}.")

    # Qubit split: first `a` qubits -> rows (R), last `b` -> columns/lanes (C).
    # Keep C a multiple of 128 (lane-dense) and bias R >= 256 for n >= 15 so the
    # M dimension fills the 256-wide MXU on v6e/v7x.
    if num_qubits <= 7:
        a_bits, b_bits = 0, num_qubits
    elif num_qubits <= 14:
        a_bits, b_bits = num_qubits - 7, 7
    else:
        a_bits = (num_qubits + 1) // 2
        b_bits = num_qubits - a_bits
    R, C = 1 << a_bits, 1 << b_bits
    # TODO(synk): for n >= ~22, factor one level deeper (B_a (x) B_b (x) B_c) to
    # cut FLOPs from ~2*dims^1.5 to ~3*dims^(4/3); two stages cover the range here.

    h_mat = hamiltonian_diag.astype(jnp.float32).reshape(R, C)

    # ---- Stage 1 (hoisted out of the per-tile loop):  A = B_a @ H ----
    if R > 1:
        tm, tn, tk = _pick_tiles(R, C, R)
        a_mat = pl.pallas_call(
            partial(_parity_matmul_kernel, parity_on_lhs=True, nbits=a_bits,
                    scale=1.0),
            out_shape=jax.ShapeDtypeStruct((R, C), jnp.float32),
            grid=(R // tm, C // tn, R // tk),
            in_specs=[pl.BlockSpec((tk, tn), lambda i, j, k: (k, j))],
            out_specs=pl.BlockSpec((tm, tn), lambda i, j, k: (i, j)),
            scratch_shapes=[pltpu.VMEM((tm, tn), jnp.float32)],
            compiler_params=_stage_params(tk * tn, tm * tn, tm * tk),
        )(h_mat)
    else:
        a_mat = h_mat

    # ---- Stage 2:  Coefs = A @ B_b / dims ----
    tm, tn, tk = _pick_tiles(R, C, C)
    coefs = pl.pallas_call(
        partial(_parity_matmul_kernel, parity_on_lhs=False, nbits=b_bits,
                scale=1.0 / dims),
        out_shape=jax.ShapeDtypeStruct((R, C), jnp.float32),
        grid=(R // tm, C // tn, C // tk),
        in_specs=[pl.BlockSpec((tm, tk), lambda i, j, k: (i, k))],
        out_specs=pl.BlockSpec((tm, tn), lambda i, j, k: (i, j)),
        scratch_shapes=[pltpu.VMEM((tm, tn), jnp.float32)],
        compiler_params=_stage_params(tm * tk, tm * tn, tk * tn),
    )(a_mat)

    coefs = jax.block_until_ready(coefs)
    coefs_host = np.asarray(jax.device_get(coefs)).reshape(dims)

    # Row-major flatten matches product('I','Z', repeat=n) enumeration
    # (first qubit = most-significant bit). Single host transfer + one tolist.
    values = coefs_host.tolist()
    keys = ("".join(p) for p in product(("I", "Z"), repeat=num_qubits))
    return dict(zip(keys, values))


def _numpy_reference(hamiltonian_diag: np.ndarray) -> dict:
    """Pure-numpy port of the PyTorch module, for correctness checking."""
    dims = hamiltonian_diag.shape[0]
    num_qubits = int(np.log2(dims))
    paulis_iz = {
        "I": np.array([1.0, 1.0], dtype=np.float32),
        "Z": np.array([1.0, -1.0], dtype=np.float32),
    }
    h = hamiltonian_diag.astype(np.float32)
    out = {}
    for paulis in product(paulis_iz.keys(), repeat=num_qubits):
        basis = reduce(np.kron, [paulis_iz[p] for p in paulis])
        out["".join(paulis)] = float(np.dot(h, basis) / dims)
    return out


if __name__ == "__main__":
    num_qubits = 12            # dims = 4096 -> H reshaped to (32, 128)
    dims = 1 << num_qubits

    key = jax.random.PRNGKey(0)
    hamiltonian_diag = jax.random.normal(key, (dims,), dtype=jnp.float32)

    decomposition = hamiltonian_to_pauli_string(hamiltonian_diag)

    # Verify against the pure-numpy port of the original module.
    ref = _numpy_reference(np.asarray(jax.device_get(hamiltonian_diag)))
    for name, ref_val in ref.items():
        assert np.allclose(decomposition[name], ref_val,
                           rtol=1e-4, atol=1e-5), (
            name, decomposition[name], ref_val
        )

    print("KERNEL_OK")
</pallas_src>

<mosaic_0001>
module attributes {stable_mosaic.version = 11 : i64} {
  func.func @_parity_matmul_kernel(%arg0: i32, %arg1: i32, %arg2: i32, %arg3: memref<32x128xf32, #tpu.memory_space<vmem>>, %arg4: memref<16x128xf32, #tpu.memory_space<vmem>>, %arg5: memref<16x128xf32, #tpu.memory_space<vmem>>) attributes {dimension_semantics = [#tpu.dimension_semantics<parallel>, #tpu.dimension_semantics<parallel>, #tpu.dimension_semantics<arbitrary>], iteration_bounds = array<i64: 2, 1, 1>, scalar_prefetch = 0 : i64, scratch_operands = 1 : i64, tpu.core_type = #tpu.core_type<tc>, window_params = [{transform_indices = @transform_0, window_bounds = array<i64: 32, 128>}, {transform_indices = @transform_1, window_bounds = array<i64: 16, 128>}]} {
    %c0_i32 = arith.constant 0 : i32
    %0 = arith.cmpi eq, %arg2, %c0_i32 : i32
    %1 = arith.extui %0 : i1 to i32
    %c0_i32_0 = arith.constant 0 : i32
    %2 = arith.cmpi ne, %1, %c0_i32_0 : i32
    scf.if %2 {
      %cst_9 = arith.constant 0.000000e+00 : f32
      %36 = vector.broadcast %cst_9 : f32 to vector<16x128xf32>
      %c0_10 = arith.constant 0 : index
      %c0_11 = arith.constant 0 : index
      %37 = vector.load %arg5[%c0_10, %c0_11] : memref<16x128xf32, #tpu.memory_space<vmem>>, vector<16x128xf32>
      tpu.vector_store %arg5[%c0_10, %c0_11], %36 {strides = array<i32>} : memref<16x128xf32, #tpu.memory_space<vmem>>, vector<16x128xf32>,
    } else {
    }
    %3 = tpu.iota {dimensions = array<i32: 0>} : vector<16x32xi32>
    %c16_i32 = arith.constant 16 : i32
    %4 = arith.muli %arg0, %c16_i32 : i32
    %5 = vector.broadcast %4 : i32 to vector<16x32xi32>
    %6 = arith.addi %3, %5 : vector<16x32xi32>
    %7 = tpu.iota {dimensions = array<i32: 1>} : vector<16x32xi32>
    %c32_i32 = arith.constant 32 : i32
    %8 = arith.muli %arg2, %c32_i32 : i32
    %9 = vector.broadcast %8 : i32 to vector<16x32xi32>
    %10 = arith.addi %7, %9 : vector<16x32xi32>
    %11 = arith.andi %6, %10 : vector<16x32xi32>
    %c4_i32 = arith.constant 4 : i32
    %12 = vector.broadcast %c4_i32 : i32 to vector<16x32xi32>
    %13 = arith.shrsi %11, %12 : vector<16x32xi32>
    %14 = arith.xori %11, %13 : vector<16x32xi32>
    %c2_i32 = arith.constant 2 : i32
    %15 = vector.broadcast %c2_i32 : i32 to vector<16x32xi32>
    %16 = arith.shrsi %14, %15 : vector<16x32xi32>
    %17 = arith.xori %14, %16 : vector<16x32xi32>
    %c1_i32 = arith.constant 1 : i32
    %18 = vector.broadcast %c1_i32 : i32 to vector<16x32xi32>
    %19 = arith.shrsi %17, %18 : vector<16x32xi32>
    %20 = arith.xori %17, %19 : vector<16x32xi32>
    %c1_i32_1 = arith.constant 1 : i32
    %21 = vector.broadcast %c1_i32_1 : i32 to vector<16x32xi32>
    %22 = arith.andi %20, %21 : vector<16x32xi32>
    %c31_i32 = arith.constant 31 : i32
    %23 = vector.broadcast %c31_i32 : i32 to vector<16x32xi32>
    %24 = arith.shli %22, %23 : vector<16x32xi32>
    %c1065353216_i32 = arith.constant 1065353216 : i32
    %25 = vector.broadcast %c1065353216_i32 : i32 to vector<16x32xi32>
    %26 = arith.ori %24, %25 : vector<16x32xi32>
    %27 = tpu.bitcast %26 : vector<16x32xi32> -> vector<16x32xf32>
    %c0 = arith.constant 0 : index
    %c0_2 = arith.constant 0 : index
    %28 = vector.load %arg5[%c0, %c0_2] : memref<16x128xf32, #tpu.memory_space<vmem>>, vector<16x128xf32>
    %c0_3 = arith.constant 0 : index
    %c0_4 = arith.constant 0 : index
    %29 = vector.load %arg3[%c0_3, %c0_4] : memref<32x128xf32, #tpu.memory_space<vmem>>, vector<32x128xf32>
    %cst = arith.constant dense<0.000000e+00> : vector<16x128xf32>
    %30 = tpu.matmul %27, %29, %cst {dimension_numbers = #tpu.dot_dimension_numbers<[1], [0], [0], [1], [0, 0, 1, 1], [], []>, precision = #tpu.contract_precision<fp32>} : vector<16x32xf32>, vector<32x128xf32>, vector<16x128xf32> -> vector<16x128xf32>
    %31 = arith.addf %28, %30 : vector<16x128xf32>
    %c0_5 = arith.constant 0 : index
    %c0_6 = arith.constant 0 : index
    %32 = vector.load %arg5[%c0_5, %c0_6] : memref<16x128xf32, #tpu.memory_space<vmem>>, vector<16x128xf32>
    tpu.vector_store %arg5[%c0_5, %c0_6], %31 {strides = array<i32>} : memref<16x128xf32, #tpu.memory_space<vmem>>, vector<16x128xf32>,
    %c0_i32_7 = arith.constant 0 : i32
    %33 = arith.cmpi eq, %arg2, %c0_i32_7 : i32
    %34 = arith.extui %33 : i1 to i32
    %c0_i32_8 = arith.constant 0 : i32
    %35 = arith.cmpi ne, %34, %c0_i32_8 : i32
    scf.if %35 {
      %c0_9 = arith.constant 0 : index
      %c0_10 = arith.constant 0 : index
      %36 = vector.load %arg5[%c0_9, %c0_10] : memref<16x128xf32, #tpu.memory_space<vmem>>, vector<16x128xf32>
      %cst_11 = arith.constant 1.000000e+00 : f32
      %37 = vector.broadcast %cst_11 : f32 to vector<16x128xf32>
      %38 = arith.mulf %36, %37 : vector<16x128xf32>
      %c0_12 = arith.constant 0 : index
      %c0_13 = arith.constant 0 : index
      %39 = vector.load %arg4[%c0_12, %c0_13] : memref<16x128xf32, #tpu.memory_space<vmem>>, vector<16x128xf32>
      tpu.vector_store %arg4[%c0_12, %c0_13], %38 {strides = array<i32>} : memref<16x128xf32, #tpu.memory_space<vmem>>, vector<16x128xf32>,
    } else {
    }
    return
  }
  func.func @transform_0(%arg0: i32, %arg1: i32, %arg2: i32) -> (i32, i32) {
    %c0_i32 = arith.constant 0 : i32
    return %arg2, %arg1 : i32, i32
  }
  func.func @transform_1(%arg0: i32, %arg1: i32, %arg2: i32) -> (i32, i32) {
    %c0_i32 = arith.constant 0 : i32
    return %arg0, %arg1 : i32, i32
  }
}

</mosaic_0001>

<llo_original>
// kernel: tpu_custom_call.1
$region0: #{tpu_custom_call.1}
  #allocation0 [shape = 'u32[]', space=smem, size = 0x4, offset = 0x4, fixed_abs, tag = 'smem constant byte address 0x4 - core index']
  #allocation1 [shape = 'u32[72,128]{1,0:T(1,128)}', space=vmem, size = 0x9000, scoped, tag = 'internal scratch']
  #allocation2 [shape = 'f32[16,128]{1,0:T(8,128)}', space=vmem, size = 0x2000, scoped, tag = 'scratch operand']
  %s0 = inlined_call_operand.hbm [shape: f32[32,128], index: 0, kind: input, shape index: {}]
  %s1 = inlined_call_operand.hbm [shape: f32[32,128], index: 1, kind: output, shape index: {}]
  %s2 = sld [smem:[#allocation0]]
  $region49: #{tpu_custom_call.1} parent=0
    _
  %s4 = ssub.s32 1, %s2
  %s5 = scalar_select 0, %s4, %s2
  $region1: #{tpu_custom_call.1} parent=0
    #allocation3 [shape = 'u8[16384]{0}', space=vmem, size = 0x4000, scoped, tag = 'input window, operand 0, single buffered']
    #allocation4 [shape = 's32[2]{0}', space=sflag, size = 0x8, scoped, tag = 'scoped memory for tpu_custom_call.1']
    #allocation5 [shape = 's32[2]{0}', space=sflag, size = 0x8, scoped, tag = 'scoped memory for tpu_custom_call.1']
    #allocation6 [shape = 'u8[16384]{0}', space=vmem, size = 0x4000, scoped, tag = 'output window, operand 0']
    %6 = vsyncpa [#allocation4], 0
    %7 = vsyncpa [#allocation5], 0
    %s8 = scalar_lea.sflag [#allocation5], 1
    %9 = vsyncpa %s8, 0
    loop: start=0, step=1, limit=4
    $region2: #{tpu_custom_call.1} parent=1 // loop_pre_header
      _
    $region3: #{tpu_custom_call.1} parent=1 // loop_header
      %s11 = sphi 0, %s15
      %p12 = scmp.ge.s32.totalorder %s11, 4
      %s18 = sphi 0, %s37
      %s19 = sphi 0, %s33
      %s20 = sphi 0, %s29
      %s21 = sphi 0, %s18
      %s22 = sphi 0, %s19
      %s23 = sphi 0, %s20
      %s24 = sphi 0, %s21
      %s25 = sphi 0, %s22
      %s26 = sphi 0, %s23
      %s42 = sphi 0, %s44
      %s45 = sphi 0, %s42
      %s46 = sphi 0, %s45
      %s62 = sphi 0, %s46
      %s70 = sphi 0, %s72
      %s73 = sphi 0, %s70
      %s74 = sphi 0, %s73
      %s90 = sphi 0, %s74
    $region4: #{tpu_custom_call.1} parent=1 // loop_header_branch
      %14 = sbr.rel (%p12) target = $region8
    $region5: #{tpu_custom_call.1} parent=1 // loop_body
      %s16 = ssub.s32 %s11, 1
      %s17 = ssub.s32 %s11, 2
      %s27 = sadd.s32 1, %s20
      %p28 = scmp.ge.s32.totalorder %s27, 1
      %s29 = scalar_select %p28, 0, %s27
      %s30 = sadd.s32 1, %s19
      %s31 = scalar_select %p28, %s30, %s19
      %p32 = scmp.ge.s32.totalorder %s31, 1
      %s33 = scalar_select %p32, 0, %s31
      %s34 = sadd.s32 1, %s18
      %s35 = scalar_select %p32, %s34, %s18
      %p36 = scmp.ge.s32.totalorder %s35, 2
      %s37 = scalar_select %p36, 0, %s35
      %s38 = ssub.s32 %s20, %s29
      %s39 = ssub.s32 %s19, %s33
      %s40 = sor.u32 %s38, %s39
      %p41 = scmp.eq.s32.totalorder %s40, 0
      %s43 = sadd.s32 %s42, 1
      %s44 = scalar_select %p41, %s42, %s43
      %p47 = pneg %p41
      %p48 = scmp.eq.s32.totalorder %s11, 1
      %p49 = por %p47, %p48
      %p50 = scmp.ne.s32.totalorder %s42, %s45
      %p51 = scmp.eq.s32.totalorder %s11, 0
      %p52 = por %p50, %p51
      %p53 = scmp.ne.s32.totalorder %s42, %s45
      %p54 = scmp.eq.s32.totalorder %s16, 1
      %p55 = por %p53, %p54
      %p56 = scmp.ne.s32.totalorder %s45, %s46
      %p57 = scmp.eq.s32.totalorder %s16, 0
      %p58 = por %p56, %p57
      %p59 = scmp.ne.s32.totalorder %s45, %s46
      %p60 = scmp.eq.s32.totalorder %s17, 1
      %p61 = por %p59, %p60
      %p63 = scmp.ne.s32.totalorder %s46, %s62
      %p64 = scmp.eq.s32.totalorder %s17, 0
      %p65 = por %p63, %p64
      %s66 = ssub.s32 %s18, %s37
      %s67 = ssub.s32 %s19, %s33
      %s68 = sor.u32 %s66, %s67
      %p69 = scmp.eq.s32.totalorder %s68, 0
      %s71 = sadd.s32 %s70, 1
      %s72 = scalar_select %p69, %s70, %s71
      %p75 = pneg %p69
      %p76 = scmp.eq.s32.totalorder %s11, 1
      %p77 = por %p75, %p76
      %p78 = scmp.ne.s32.totalorder %s70, %s73
      %p79 = scmp.eq.s32.totalorder %s11, 0
      %p80 = por %p78, %p79
      %p81 = scmp.ne.s32.totalorder %s70, %s73
      %p82 = scmp.eq.s32.totalorder %s16, 1
      %p83 = por %p81, %p82
      %p84 = scmp.ne.s32.totalorder %s73, %s74
      %p85 = scmp.eq.s32.totalorder %s16, 0
      %p86 = por %p84, %p85
      %p87 = scmp.ne.s32.totalorder %s73, %s74
      %p88 = scmp.eq.s32.totalorder %s17, 1
      %p89 = por %p87, %p88
      %p91 = scmp.ne.s32.totalorder %s74, %s90
      %p92 = scmp.eq.s32.totalorder %s17, 0
      %p93 = por %p91, %p92
      %p94 = scmp.le.s32.totalorder 1, %s11
      %p95 = scmp.lt.s32.totalorder %s11, 3
      %p96 = pnand %p94, %p95
      %p97 = pneg %p96
      // Predicated region
      $region9: #{tpu_custom_call.1} parent=5 // pred_check
        _
      $region10: #{tpu_custom_call.1} parent=5 // pred_check_branch
        %99 = sbr.rel (%p96) target = $region12
      $region11: #{tpu_custom_call.1} parent=5 // pred_region
        %s100 = ssub.s32 %s11, 1
        // Predicated region
        $region13: #{tpu_custom_call.1} parent=11 // pred_check
          %p101 = pneg %p58
        $region14: #{tpu_custom_call.1} parent=11 // pred_check_branch
          %103 = sbr.rel (%p101) target = $region16
        $region15: #{tpu_custom_call.1} parent=11 // pred_region
          %s104 = smul.u32 4, %s23
          %106 = vsyncadd [#allocation4], 0
          %s107 = sadd.s32 %s22, %s104
          %s108 = smul.addr %s107, 8
          %s109 = scalar_lea.hbm %s0, %s108
          %s110 = sshll.u32 %s109, 4
          %s111 = int_to_ptr.hbm [resolvable:$true] %s110
          %s112 = sshll.u32 [#allocation3], 4
          %s113 = int_to_ptr.vmem [resolvable:$true] %s112
          %118 = dma.hbm_to_vmem [thread:$0]  %s111, 512, %s113, [#allocation4], 128, 128, 8
        $region16: #{tpu_custom_call.1} parent=11 // pred_fallthru
          _
      $region12: #{tpu_custom_call.1} parent=5 // pred_fallthru
        _
      %p119 = scmp.lt.s32.totalorder %s11, 2
      // Predicated region
      $region17: #{tpu_custom_call.1} parent=5 // pred_check
        %p120 = pneg %p119
      $region18: #{tpu_custom_call.1} parent=5 // pred_check_branch
        %122 = sbr.rel (%p120) target = $region20
      $region19: #{tpu_custom_call.1} parent=5 // pred_region
        _
      $region20: #{tpu_custom_call.1} parent=5 // pred_fallthru
        _
      %p123 = scmp.le.s32.totalorder 1, %s11
      %p124 = scmp.lt.s32.totalorder %s11, 3
      %p125 = pnand %p123, %p124
      %p126 = pneg %p125
      // Predicated region
      $region21: #{tpu_custom_call.1} parent=5 // pred_check
        _
      $region22: #{tpu_custom_call.1} parent=5 // pred_check_branch
        %128 = sbr.rel (%p125) target = $region24
      $region23: #{tpu_custom_call.1} parent=5 // pred_region
        %s129 = ssub.s32 %s11, 1
        // Predicated region
        $region25: #{tpu_custom_call.1} parent=23 // pred_check
          %p130 = pneg %p58
        $region26: #{tpu_custom_call.1} parent=23 // pred_check_branch
          %132 = sbr.rel (%p130) target = $region28
        $region27: #{tpu_custom_call.1} parent=23 // pred_region
          %134 = dma.done [#allocation4], 512
        $region28: #{tpu_custom_call.1} parent=23 // pred_fallthru
          _
        %p135 = pneg %p58
        %p136 = pneg %p55
        %p137 = pneg %p86
        %p138 = pneg %p83
        %s139 = sand.u32 %s73, 1
        %s140 = scalar_lea.sflag [#allocation5], %s139
        %s141 = sand.u32 %s73, 1
        %s142 = smul.addr %s141, 16
        %s143 = scalar_lea.vmem [#allocation6], %s142
        %s144 = smul.u32 4, %s23
        %s145 = smul.u32 2, %s21
        %p146 = scmp.eq.s32.totalorder %s23, 0
        // Predicated region
        $region29: #{tpu_custom_call.1} parent=23 // pred_check
          %p147 = pneg %p146
        $region30: #{tpu_custom_call.1} parent=23 // pred_check_branch
          %149 = sbr.rel (%p147) target = $region32
        $region31: #{tpu_custom_call.1} parent=23 // pred_region
          %150 = vst [vmem:[#allocation2] sm:$0xff] 0.0
          %151 = vst [vmem:[#allocation2 + $0x8] sm:$0xff] 0.0
        $region32: #{tpu_custom_call.1} parent=23 // pred_fallthru
          _
        %v152 = vlaneseq
        %v153 = vshrl.u32 %v152, 7
        %v154 = vadd.s32 %v153, 8
        %s155 = smul.u32 %s21, 16
        %v156 = vstv %s155
        %v157 = vadd.s32 %v153, %v156
        %v158 = vadd.s32 %v154, %v156
        %v159 = vlaneseq
        %v160 = vand.u32 %v159, 127
        %s161 = smul.u32 %s23, 32
        %v162 = vstv %s161
        %v163 = vadd.s32 %v160, %v162
        %v164 = vand.u32 %v157, %v163
        %v165 = vand.u32 %v158, %v163
        %v166 = vshra.s32 %v164, 4
        %v167 = vshra.s32 %v165, 4
        %v168 = vxor.u32 %v164, %v166
        %v169 = vxor.u32 %v165, %v167
        %v170 = vshra.s32 %v168, 2
        %v171 = vshra.s32 %v169, 2
        %v172 = vxor.u32 %v168, %v170
        %v173 = vxor.u32 %v169, %v171
        %v174 = vshra.s32 %v172, 1
        %v175 = vshra.s32 %v173, 1
        %v176 = vxor.u32 %v172, %v174
        %v177 = vxor.u32 %v173, %v175
        %v178 = vand.u32 %v176, 1
        %v179 = vand.u32 %v177, 1
        %v180 = vshll.u32 %v178, 31
        %v181 = vshll.u32 %v179, 31
        %v182 = vor.u32 %v180, 1065353216
        %v183 = vor.u32 %v181, 1065353216
        %v184 = vld [vmem:[#allocation2] sm:$0xff]
        %v185 = vld [vmem:[#allocation2 + $0x8] sm:$0xff]
        %v186 = vld [vmem:[#allocation3] sm:$0xff]
        %v187 = vld [vmem:[#allocation3 + $0x8] sm:$0xff]
        %v188 = vld [vmem:[#allocation3 + $0x10] sm:$0xff]
        %v189 = vld [vmem:[#allocation3 + $0x18] sm:$0xff]
        %vm190 = vcmask 261120
        %v191 = vsel %vm190, %v182, 0
        %v193 = vsel %vm190, %v183, 0
        %195 = vmatpush.msra.mxu0 0.0
        %196 = vmatpush.msra.mxu0 0.0
        %197 = vmatpush.msra.mxu0 0.0
        %198 = vmatpush.msra.mxu0 0.0
        %199 = vmatpush.msra.mxu0 0.0
        %200 = vmatpush.msra.mxu0 0.0
        %201 = vmatpush.msra.mxu0 0.0
        %202 = vmatpush.msra.mxu0 0.0
        %203 = vmatpush.msra.mxu0 0.0
        %204 = vmatpush.msra.mxu0 0.0
        %205 = vmatpush.msra.mxu0 0.0
        %206 = vmatpush.msra.mxu0 0.0
        %v207 = vand.u32 %v189, 4294901760
        %208 = vmatpush.msra.mxu0 %v207
        %v209 = vand.u32 %v188, 4294901760
        %210 = vmatpush.msra.mxu0 %v209
        %v211 = vand.u32 %v187, 4294901760
        %212 = vmatpush.msra.mxu0 %v211
        %v213 = vand.u32 %v186, 4294901760
        %214 = vmatpush.msra.mxu0 %v213
        %v215 = vand.u32 %v191, 4294901760
        %v216 = vsub.f32 %v191, %v215
        %v217 = vand.u32 %v216, 4294901760
        %v218 = vsub.f32 %v216, %v217
        %v219 = vand.u32 %v218, 4294901760
        %220 = vmatmul.f32.gmra.mxu0 %v219
        %v221 = vpop.f32.mrf.mxu0
        %v222 = vadd.f32 0.0, %v221
        %v223 = vand.u32 %v193, 4294901760
        %v224 = vsub.f32 %v193, %v223
        %v225 = vand.u32 %v224, 4294901760
        %v226 = vsub.f32 %v224, %v225
        %v227 = vand.u32 %v226, 4294901760
        %228 = vmatmul.f32.gmra.mxu0 %v227
        %v229 = vpop.f32.mrf.mxu0
        %v230 = vadd.f32 0.0, %v229
        %231 = vdwg.mxu0
        %232 = vmatpush.msra.mxu0 0.0
        %233 = vmatpush.msra.mxu0 0.0
        %234 = vmatpush.msra.mxu0 0.0
        %235 = vmatpush.msra.mxu0 0.0
        %236 = vmatpush.msra.mxu0 0.0
        %237 = vmatpush.msra.mxu0 0.0
        %238 = vmatpush.msra.mxu0 0.0
        %239 = vmatpush.msra.mxu0 0.0
        %240 = vmatpush.msra.mxu0 0.0
        %241 = vmatpush.msra.mxu0 0.0
        %242 = vmatpush.msra.mxu0 0.0
        %243 = vmatpush.msra.mxu0 0.0
        %v244 = vand.u32 %v189, 4294901760
        %v245 = vsub.f32 %v189, %v244
        %v246 = vand.u32 %v245, 4294901760
        %v247 = vsub.f32 %v245, %v246
        %v248 = vand.u32 %v247, 4294901760
        %249 = vmatpush.msra.mxu0 %v248
        %v250 = vand.u32 %v188, 4294901760
        %v251 = vsub.f32 %v188, %v250
        %v252 = vand.u32 %v251, 4294901760
        %v253 = vsub.f32 %v251, %v252
        %v254 = vand.u32 %v253, 4294901760
        %255 = vmatpush.msra.mxu0 %v254
        %v256 = vand.u32 %v187, 4294901760
        %v257 = vsub.f32 %v187, %v256
        %v258 = vand.u32 %v257, 4294901760
        %v259 = vsub.f32 %v257, %v258
        %v260 = vand.u32 %v259, 4294901760
        %261 = vmatpush.msra.mxu0 %v260
        %v262 = vand.u32 %v186, 4294901760
        %v263 = vsub.f32 %v186, %v262
        %v264 = vand.u32 %v263, 4294901760
        %v265 = vsub.f32 %v263, %v264
        %v266 = vand.u32 %v265, 4294901760
        %267 = vmatpush.msra.mxu0 %v266
        %v268 = vand.u32 %v191, 4294901760
        %269 = vmatmul.f32.gmra.mxu0 %v268
        %v270 = vpop.f32.mrf.mxu0
        %v271 = vadd.f32 %v222, %v270
        %v272 = vand.u32 %v193, 4294901760
        %273 = vmatmul.f32.gmra.mxu0 %v272
        %v274 = vpop.f32.mrf.mxu0
        %v275 = vadd.f32 %v230, %v274
        %276 = vdwg.mxu0
        %277 = vmatpush.msra.mxu0 0.0
        %278 = vmatpush.msra.mxu0 0.0
        %279 = vmatpush.msra.mxu0 0.0
        %280 = vmatpush.msra.mxu0 0.0
        %281 = vmatpush.msra.mxu0 0.0
        %282 = vmatpush.msra.mxu0 0.0
        %283 = vmatpush.msra.mxu0 0.0
        %284 = vmatpush.msra.mxu0 0.0
        %285 = vmatpush.msra.mxu0 0.0
        %286 = vmatpush.msra.mxu0 0.0
        %287 = vmatpush.msra.mxu0 0.0
        %288 = vmatpush.msra.mxu0 0.0
        %v289 = vand.u32 %v189, 4294901760
        %v290 = vsub.f32 %v189, %v289
        %291 = vmatpush.msra.mxu0 %v290
        %v292 = vand.u32 %v188, 4294901760
        %v293 = vsub.f32 %v188, %v292
        %294 = vmatpush.msra.mxu0 %v293
        %v295 = vand.u32 %v187, 4294901760
        %v296 = vsub.f32 %v187, %v295
        %297 = vmatpush.msra.mxu0 %v296
        %v298 = vand.u32 %v186, 4294901760
        %v299 = vsub.f32 %v186, %v298
        %300 = vmatpush.msra.mxu0 %v299
        %v301 = vand.u32 %v191, 4294901760
        %v302 = vsub.f32 %v191, %v301
        %303 = vmatmul.f32.gmra.mxu0 %v302
        %v304 = vpop.f32.mrf.mxu0
        %v305 = vadd.f32 %v271, %v304
        %v306 = vand.u32 %v193, 4294901760
        %v307 = vsub.f32 %v193, %v306
        %308 = vmatmul.f32.gmra.mxu0 %v307
        %v309 = vpop.f32.mrf.mxu0
        %v310 = vadd.f32 %v275, %v309
        %311 = vdwg.mxu0
        %312 = vmatpush.msra.mxu0 0.0
        %313 = vmatpush.msra.mxu0 0.0
        %314 = vmatpush.msra.mxu0 0.0
        %315 = vmatpush.msra.mxu0 0.0
        %316 = vmatpush.msra.mxu0 0.0
        %317 = vmatpush.msra.mxu0 0.0
        %318 = vmatpush.msra.mxu0 0.0
        %319 = vmatpush.msra.mxu0 0.0
        %320 = vmatpush.msra.mxu0 0.0
        %321 = vmatpush.msra.mxu0 0.0
        %322 = vmatpush.msra.mxu0 0.0
        %323 = vmatpush.msra.mxu0 0.0
        %v324 = vand.u32 %v189, 4294901760
        %325 = vmatpush.msra.mxu0 %v324
        %v326 = vand.u32 %v188, 4294901760
        %327 = vmatpush.msra.mxu0 %v326
        %v328 = vand.u32 %v187, 4294901760
        %329 = vmatpush.msra.mxu0 %v328
        %v330 = vand.u32 %v186, 4294901760
        %331 = vmatpush.msra.mxu0 %v330
        %v332 = vand.u32 %v191, 4294901760
        %v333 = vsub.f32 %v191, %v332
        %v334 = vand.u32 %v333, 4294901760
        %335 = vmatmul.f32.gmra.mxu0 %v334
        %v336 = vpop.f32.mrf.mxu0
        %v337 = vadd.f32 %v305, %v336
        %v338 = vand.u32 %v193, 4294901760
        %v339 = vsub.f32 %v193, %v338
        %v340 = vand.u32 %v339, 4294901760
        %341 = vmatmul.f32.gmra.mxu0 %v340
        %v342 = vpop.f32.mrf.mxu0
        %v343 = vadd.f32 %v310, %v342
        %344 = vdwg.mxu0
        %345 = vmatpush.msra.mxu0 0.0
        %346 = vmatpush.msra.mxu0 0.0
        %347 = vmatpush.msra.mxu0 0.0
        %348 = vmatpush.msra.mxu0 0.0
        %349 = vmatpush.msra.mxu0 0.0
        %350 = vmatpush.msra.mxu0 0.0
        %351 = vmatpush.msra.mxu0 0.0
        %352 = vmatpush.msra.mxu0 0.0
        %353 = vmatpush.msra.mxu0 0.0
        %354 = vmatpush.msra.mxu0 0.0
        %355 = vmatpush.msra.mxu0 0.0
        %356 = vmatpush.msra.mxu0 0.0
        %v357 = vand.u32 %v189, 4294901760
        %v358 = vsub.f32 %v189, %v357
        %v359 = vand.u32 %v358, 4294901760
        %360 = vmatpush.msra.mxu0 %v359
        %v361 = vand.u32 %v188, 4294901760
        %v362 = vsub.f32 %v188, %v361
        %v363 = vand.u32 %v362, 4294901760
        %364 = vmatpush.msra.mxu0 %v363
        %v365 = vand.u32 %v187, 4294901760
        %v366 = vsub.f32 %v187, %v365
        %v367 = vand.u32 %v366, 4294901760
        %368 = vmatpush.msra.mxu0 %v367
        %v369 = vand.u32 %v186, 4294901760
        %v370 = vsub.f32 %v186, %v369
        %v371 = vand.u32 %v370, 4294901760
        %372 = vmatpush.msra.mxu0 %v371
        %v373 = vand.u32 %v191, 4294901760
        %374 = vmatmul.f32.gmra.mxu0 %v373
        %v375 = vpop.f32.mrf.mxu0
        %v376 = vadd.f32 %v337, %v375
        %v377 = vand.u32 %v193, 4294901760
        %378 = vmatmul.f32.gmra.mxu0 %v377
        %v379 = vpop.f32.mrf.mxu0
        %v380 = vadd.f32 %v343, %v379
        %381 = vdwg.mxu0
        %382 = vmatpush.msra.mxu0 0.0
        %383 = vmatpush.msra.mxu0 0.0
        %384 = vmatpush.msra.mxu0 0.0
        %385 = vmatpush.msra.mxu0 0.0
        %386 = vmatpush.msra.mxu0 0.0
        %387 = vmatpush.msra.mxu0 0.0
        %388 = vmatpush.msra.mxu0 0.0
        %389 = vmatpush.msra.mxu0 0.0
        %390 = vmatpush.msra.mxu0 0.0
        %391 = vmatpush.msra.mxu0 0.0
        %392 = vmatpush.msra.mxu0 0.0
        %393 = vmatpush.msra.mxu0 0.0
        %v394 = vand.u32 %v189, 4294901760
        %395 = vmatpush.msra.mxu0 %v394
        %v396 = vand.u32 %v188, 4294901760
        %397 = vmatpush.msra.mxu0 %v396
        %v398 = vand.u32 %v187, 4294901760
        %399 = vmatpush.msra.mxu0 %v398
        %v400 = vand.u32 %v186, 4294901760
        %401 = vmatpush.msra.mxu0 %v400
        %v402 = vand.u32 %v191, 4294901760
        %403 = vmatmul.f32.gmra.mxu0 %v402
        %v404 = vpop.f32.mrf.mxu0
        %v405 = vadd.f32 %v376, %v404
        %v406 = vand.u32 %v193, 4294901760
        %407 = vmatmul.f32.gmra.mxu0 %v406
        %v408 = vpop.f32.mrf.mxu0
        %v409 = vadd.f32 %v380, %v408
        %410 = vdwg.mxu0
        %v411 = vadd.f32 %v184, %v405
        %v412 = vadd.f32 %v185, %v409
        %413 = vst [vmem:[#allocation2] sm:$0xff] %v411
        %414 = vst [vmem:[#allocation2 + $0x8] sm:$0xff] %v412
        // Predicated region
        $region33: #{tpu_custom_call.1} parent=23 // pred_check
          %p415 = pneg %p146
        $region34: #{tpu_custom_call.1} parent=23 // pred_check_branch
          %417 = sbr.rel (%p415) target = $region36
        $region35: #{tpu_custom_call.1} parent=23 // pred_region
          %v418 = vld [vmem:[#allocation2] sm:$0xff]
          %v419 = vld [vmem:[#allocation2 + $0x8] sm:$0xff]
          %420 = vst [vmem:[%s143] sm:$0xff] %v418
          %421 = vst [vmem:[%s143 + $0x8] sm:$0xff] %v419
        $region36: #{tpu_custom_call.1} parent=23 // pred_fallthru
          _
        %s422 = sand.u32 %s73, 1
        %s423 = scalar_lea.sflag [#allocation5], %s422
        %s424 = sand.u32 %s73, 1
        %s425 = smul.addr %s424, 16
        %s426 = scalar_lea.vmem [#allocation6], %s425
        // Predicated region
        $region37: #{tpu_custom_call.1} parent=23 // pred_check
          %p427 = pneg %p83
        $region38: #{tpu_custom_call.1} parent=23 // pred_check_branch
          %429 = sbr.rel (%p427) target = $region40
        $region39: #{tpu_custom_call.1} parent=23 // pred_region
          %s430 = smul.u32 2, %s21
          %432 = vsyncadd %s423, 0
          %s433 = sadd.s32 %s22, %s430
          %s434 = smul.addr %s433, 8
          %s435 = scalar_lea.hbm %s1, %s434
          %s436 = sshll.u32 %s426, 4
          %s437 = int_to_ptr.vmem [resolvable:$true] %s436
          %s438 = sshll.u32 %s435, 4
          %s439 = int_to_ptr.hbm [resolvable:$true] %s438
          %444 = dma.vmem_to_hbm [thread:$0]  %s437, 256, %s439, %s423, 128, 128, 8
        $region40: #{tpu_custom_call.1} parent=23 // pred_fallthru
          _
      $region24: #{tpu_custom_call.1} parent=5 // pred_fallthru
        _
      %p445 = scmp.le.s32.totalorder 2, %s11
      // Predicated region
      $region41: #{tpu_custom_call.1} parent=5 // pred_check
        %p446 = pneg %p445
      $region42: #{tpu_custom_call.1} parent=5 // pred_check_branch
        %448 = sbr.rel (%p446) target = $region44
      $region43: #{tpu_custom_call.1} parent=5 // pred_region
        %s449 = ssub.s32 %s11, 2
        // Predicated region
        $region45: #{tpu_custom_call.1} parent=43 // pred_check
          %p450 = pneg %p89
        $region46: #{tpu_custom_call.1} parent=43 // pred_check_branch
          %452 = sbr.rel (%p450) target = $region48
        $region47: #{tpu_custom_call.1} parent=43 // pred_region
          %s453 = sand.u32 %s74, 1
          %s454 = scalar_lea.sflag [#allocation5], %s453
          %s455 = sand.u32 %s74, 1
          %s456 = smul.addr %s455, 16
          %s457 = scalar_lea.vmem [#allocation6], %s456
          %459 = dma.done %s454, 256
        $region48: #{tpu_custom_call.1} parent=43 // pred_fallthru
          _
      $region44: #{tpu_custom_call.1} parent=5 // pred_fallthru
        _
    $region6: #{tpu_custom_call.1} parent=1 // loop_footer
      %s15 = sadd.s32 1, %s11
    $region7: #{tpu_custom_call.1} parent=1 // loop_footer_branch
      %10 = sbr.rel target = $region3
    $region8: #{tpu_custom_call.1} parent=1 // loop_exit
      _
    %460 = vsyncpa [#allocation4], 1
    %s461 = scalar_lea.sflag [#allocation4], 1
    %462 = vsyncpa %s461, 1
    %463 = vsyncpa [#allocation5], 1
    %s464 = scalar_lea.sflag [#allocation5], 1
    %465 = vsyncpa %s464, 1

</llo_original>
